<compile_context>
chip_gen: v7x
topology: tpu7x:2x2x1
jax: 0.10.0
libtpu: 0.0.40
codegen_flags: <defaults>
</compile_context>

<pallas_src>
import jax
import jax.numpy as jnp
from jax.experimental import pallas as pl
from jax.experimental.pallas import tpu as pltpu


# --------------------------------------------------------------------------- #
# Kernels
# --------------------------------------------------------------------------- #
def _hidden_kernel(x_ref, w1t_ref, b1_ref, h_ref, acc_ref):
    """hidden = x @ w1t + b1, accumulated over a K-grid on the vocab dim."""
    k = pl.program_id(0)

    @pl.when(k == 0)
    def _():
        acc_ref[...] = jnp.zeros_like(acc_ref)

    acc_ref[...] += jnp.dot(x_ref[...], w1t_ref[...],
                            preferred_element_type=jnp.float32)

    @pl.when(k == pl.num_programs(0) - 1)
    def _():
        # Bias added once, at finalize (not per K step).
        h_ref[...] = (acc_ref[...] + b1_ref[...]).astype(h_ref.dtype)


def _output_kernel(h_ref, w2t_ref, b2_ref, o_ref):
    """One vocab tile: logits = hidden @ w2t_tile + b2_tile; log_softmax(dim=0)."""
    logits = jnp.dot(h_ref[...], w2t_ref[...],
                     preferred_element_type=jnp.float32) + b2_ref[...]
    # log_softmax over dim=0 (the batch / sublane axis), exactly as in the
    # PyTorch module.  Each vocab column is independent -> exact per tile.
    m = jnp.max(logits, axis=0, keepdims=True)
    shifted = logits - m
    lse = jnp.log(jnp.sum(jnp.exp(shifted), axis=0, keepdims=True))
    o_ref[...] = (shifted - lse).astype(o_ref.dtype)


# --------------------------------------------------------------------------- #
# Wrappers
# --------------------------------------------------------------------------- #
def _pick_tile(dim, max_tile):
    """Largest multiple of 128 that divides `dim` and is <= max_tile, else dim."""
    if dim <= max_tile:
        return dim
    t = (max_tile // 128) * 128
    while t >= 128:
        if dim % t == 0:
            return t
        t -= 128
    return dim  # fallback: single (possibly large) block


def _clamp_vmem(estimate_bytes):
    # 2x headroom for compiler temporaries; floor at the usual scoped default,
    # cap at 64 MiB so the request is legal on v7x (64 MiB physical per TC).
    return int(min(max(2 * estimate_bytes, 32 * 1024 * 1024), 64 * 1024 * 1024))


def prepare_skipgram_params(w1, b1, w2, b2, compute_dtype=jnp.float32):
    """Convert torch-Linear-layout weights to the kernel layout ONCE (not per call).

    w1: (E, V), b1: (E,), w2: (V, E), b2: (V,)   (torch nn.Linear layout)
    Returns w1t: (V, E), b1: (1, E) f32, w2t: (E, V), b2: (1, V) f32.
    """
    w1t = jnp.asarray(w1, jnp.float32).T.astype(compute_dtype)   # (V, E)
    w2t = jnp.asarray(w2, jnp.float32).T.astype(compute_dtype)   # (E, V)
    b1r = jnp.asarray(b1, jnp.float32).reshape(1, -1)
    b2r = jnp.asarray(b2, jnp.float32).reshape(1, -1)
    return w1t, b1r, w2t, b2r


def skipgram_apply(x, w1t, b1r, w2t, b2r, *, tk=512, tn=512):
    """Forward pass.  x: (B, V).  Weights already in kernel layout (see above)."""
    B, V = x.shape
    E = w1t.shape[1]
    compute_dtype = w1t.dtype
    x = x.astype(compute_dtype)
    dsize = jnp.dtype(compute_dtype).itemsize

    tk = _pick_tile(V, tk)   # contraction tile for the hidden projection
    tn = _pick_tile(V, tn)   # lane-dense output / w2 tile

    # ---- hidden = x @ w1t + b1 : K-grid over V, resident f32 accumulator ----
    vmem_h = 2 * (B * tk + tk * E) * dsize + E * 4 + 2 * B * E * dsize + B * E * 4
    hidden = pl.pallas_call(
        _hidden_kernel,
        out_shape=jax.ShapeDtypeStruct((B, E), compute_dtype),
        grid=(V // tk,),
        in_specs=[
            pl.BlockSpec((B, tk), lambda k: (0, k)),   # x tile (stream K)
            pl.BlockSpec((tk, E), lambda k: (k, 0)),   # w1t tile (stream K)
            pl.BlockSpec((1, E), lambda k: (0, 0)),    # b1 (resident)
        ],
        out_specs=pl.BlockSpec((B, E), lambda k: (0, 0)),
        scratch_shapes=[pltpu.VMEM((B, E), jnp.float32)],
        compiler_params=pltpu.CompilerParams(
            dimension_semantics=("arbitrary",),        # reduction axis
            vmem_limit_bytes=_clamp_vmem(vmem_h)),
    )(x, w1t, b1r)

    # ---- per-vocab-tile: logits + log_softmax over batch --------------------
    vmem_o = B * E * dsize + 2 * (E * tn) * dsize + 2 * tn * 4 + 2 * (B * tn) * 4
    out = pl.pallas_call(
        _output_kernel,
        out_shape=jax.ShapeDtypeStruct((B, V), jnp.float32),
        grid=(V // tn,),
        in_specs=[
            pl.BlockSpec((B, E), lambda j: (0, 0)),    # hidden, resident across grid
            pl.BlockSpec((E, tn), lambda j: (0, j)),   # w2t tile, double-buffered DMA
            pl.BlockSpec((1, tn), lambda j: (0, j)),   # b2 tile
        ],
        out_specs=pl.BlockSpec((B, tn), lambda j: (0, j)),  # lane-dense output tile
        compiler_params=pltpu.CompilerParams(
            dimension_semantics=("parallel",),         # V tiles independent -> 2 TCs on v7x
            vmem_limit_bytes=_clamp_vmem(vmem_o)),
    )(hidden, w2t, b2r)
    return out


def skipgram_forward(x, w1, b1, w2, b2, compute_dtype=jnp.float32, **tile_kwargs):
    """Convenience wrapper taking torch-layout weights (transposes once here).

    For training at real sizes, call prepare_skipgram_params() once and reuse.
    """
    params = prepare_skipgram_params(w1, b1, w2, b2, compute_dtype)
    return skipgram_apply(x, *params, **tile_kwargs)
    # TODO(synk): batch padding to 128+ rows would further feed the MXU, but it
    # is not semantics-preserving here because the softmax is over the batch
    # dim; it would need explicit masking of padded rows in the reduction.


# --------------------------------------------------------------------------- #
# Demo / self-check
# --------------------------------------------------------------------------- #
if __name__ == "__main__":
    # Small, deterministic synthetic setup (no checkpoint load).
    batch, vocab_size, embedding_size = 16, 512, 128

    key = jax.random.PRNGKey(0)
    kx, k1, k2, k3, k4 = jax.random.split(key, 5)

    x = jax.random.normal(kx, (batch, vocab_size), dtype=jnp.float32)
    # torch.nn.Linear(vocab, embed): weight (E, V), bias (E,)
    w1 = jax.random.normal(k1, (embedding_size, vocab_size), jnp.float32) * 0.1
    b1 = jax.random.normal(k2, (embedding_size,), jnp.float32) * 0.1
    # torch.nn.Linear(embed, vocab): weight (V, E), bias (V,)
    w2 = jax.random.normal(k3, (vocab_size, embedding_size), jnp.float32) * 0.1
    b2 = jax.random.normal(k4, (vocab_size,), jnp.float32) * 0.1

    # Pure-JAX reference of the same math.
    hidden_ref = x @ w1.T + b1
    logits_ref = hidden_ref @ w2.T + b2
    ref = jax.nn.log_softmax(logits_ref, axis=0)

    # f32 path (tiles of 256 -> grid=(2,) for both kernels), exact check.
    params_f32 = prepare_skipgram_params(w1, b1, w2, b2, jnp.float32)
    out = jax.block_until_ready(skipgram_apply(x, *params_f32, tk=256, tn=256))
    assert out.shape == (batch, vocab_size)
    assert jnp.allclose(out, ref, atol=1e-4, rtol=1e-4)

    # bf16 weight/activation path (f32 accumulation + f32 softmax) — what you
    # would use at real word2vec sizes; checked loosely against the f32 ref.
    params_bf16 = prepare_skipgram_params(w1, b1, w2, b2, jnp.bfloat16)
    out_bf16 = jax.block_until_ready(skipgram_apply(x, *params_bf16, tk=256, tn=256))
    assert jnp.allclose(out_bf16, ref, atol=2e-1)

    print("KERNEL_OK")
</pallas_src>

<mosaic_0001>
module attributes {stable_mosaic.version = 11 : i64} {
  func.func @_hidden_kernel(%arg0: i32, %arg1: memref<16x256xf32, #tpu.memory_space<vmem>>, %arg2: memref<256x128xf32, #tpu.memory_space<vmem>>, %arg3: memref<1x128xf32, #tpu.memory_space<vmem>>, %arg4: memref<16x128xf32, #tpu.memory_space<vmem>>, %arg5: memref<16x128xf32, #tpu.memory_space<vmem>>) attributes {dimension_semantics = [#tpu.dimension_semantics<arbitrary>], iteration_bounds = array<i64: 2>, scalar_prefetch = 0 : i64, scratch_operands = 1 : i64, tpu.core_type = #tpu.core_type<tc>, window_params = [{transform_indices = @transform_0, window_bounds = array<i64: 16, 256>}, {transform_indices = @transform_1, window_bounds = array<i64: 256, 128>}, {pipeline_mode = #tpu.pipeline_mode<synchronous>, transform_indices = @transform_2, window_bounds = array<i64: 1, 128>}, {pipeline_mode = #tpu.pipeline_mode<synchronous>, transform_indices = @transform_3, window_bounds = array<i64: 16, 128>}]} {
    %c0_i32 = arith.constant 0 : i32
    %0 = arith.cmpi eq, %arg0, %c0_i32 : i32
    %1 = arith.extui %0 : i1 to i32
    %c0_i32_0 = arith.constant 0 : i32
    %2 = arith.cmpi ne, %1, %c0_i32_0 : i32
    scf.if %2 {
      %cst_9 = arith.constant 0.000000e+00 : f32
      %12 = vector.broadcast %cst_9 : f32 to vector<16x128xf32>
      %c0_10 = arith.constant 0 : index
      %c0_11 = arith.constant 0 : index
      %13 = vector.load %arg5[%c0_10, %c0_11] : memref<16x128xf32, #tpu.memory_space<vmem>>, vector<16x128xf32>
      tpu.vector_store %arg5[%c0_10, %c0_11], %12 {strides = array<i32>} : memref<16x128xf32, #tpu.memory_space<vmem>>, vector<16x128xf32>,
    } else {
    }
    %c0 = arith.constant 0 : index
    %c0_1 = arith.constant 0 : index
    %3 = vector.load %arg5[%c0, %c0_1] : memref<16x128xf32, #tpu.memory_space<vmem>>, vector<16x128xf32>
    %c0_2 = arith.constant 0 : index
    %c0_3 = arith.constant 0 : index
    %4 = vector.load %arg1[%c0_2, %c0_3] : memref<16x256xf32, #tpu.memory_space<vmem>>, vector<16x256xf32>
    %c0_4 = arith.constant 0 : index
    %c0_5 = arith.constant 0 : index
    %5 = vector.load %arg2[%c0_4, %c0_5] : memref<256x128xf32, #tpu.memory_space<vmem>>, vector<256x128xf32>
    %cst = arith.constant dense<0.000000e+00> : vector<16x128xf32>
    %6 = tpu.matmul %4, %5, %cst {dimension_numbers = #tpu.dot_dimension_numbers<[1], [0], [0], [1], [0, 0, 1, 1], [], []>} : vector<16x256xf32>, vector<256x128xf32>, vector<16x128xf32> -> vector<16x128xf32>
    %7 = arith.addf %3, %6 : vector<16x128xf32>
    %c0_6 = arith.constant 0 : index
    %c0_7 = arith.constant 0 : index
    %8 = vector.load %arg5[%c0_6, %c0_7] : memref<16x128xf32, #tpu.memory_space<vmem>>, vector<16x128xf32>
    tpu.vector_store %arg5[%c0_6, %c0_7], %7 {strides = array<i32>} : memref<16x128xf32, #tpu.memory_space<vmem>>, vector<16x128xf32>,
    %c1_i32 = arith.constant 1 : i32
    %9 = arith.cmpi eq, %arg0, %c1_i32 : i32
    %10 = arith.extui %9 : i1 to i32
    %c0_i32_8 = arith.constant 0 : i32
    %11 = arith.cmpi ne, %10, %c0_i32_8 : i32
    scf.if %11 {
      %c0_9 = arith.constant 0 : index
      %c0_10 = arith.constant 0 : index
      %12 = vector.load %arg5[%c0_9, %c0_10] : memref<16x128xf32, #tpu.memory_space<vmem>>, vector<16x128xf32>
      %c0_11 = arith.constant 0 : index
      %c0_12 = arith.constant 0 : index
      %13 = vector.load %arg3[%c0_11, %c0_12] : memref<1x128xf32, #tpu.memory_space<vmem>>, vector<1x128xf32>
      %14 = vector.broadcast %13 : vector<1x128xf32> to vector<16x128xf32>
      %15 = arith.addf %12, %14 : vector<16x128xf32>
      %c0_13 = arith.constant 0 : index
      %c0_14 = arith.constant 0 : index
      %16 = vector.load %arg4[%c0_13, %c0_14] : memref<16x128xf32, #tpu.memory_space<vmem>>, vector<16x128xf32>
      tpu.vector_store %arg4[%c0_13, %c0_14], %15 {strides = array<i32>} : memref<16x128xf32, #tpu.memory_space<vmem>>, vector<16x128xf32>,
    } else {
    }
    return
  }
  func.func @transform_0(%arg0: i32) -> (i32, i32) {
    %c0_i32 = arith.constant 0 : i32
    %c0_i32_0 = arith.constant 0 : i32
    return %c0_i32, %arg0 : i32, i32
  }
  func.func @transform_1(%arg0: i32) -> (i32, i32) {
    %c0_i32 = arith.constant 0 : i32
    %c0_i32_0 = arith.constant 0 : i32
    return %arg0, %c0_i32 : i32, i32
  }
  func.func @transform_2(%arg0: i32) -> (i32, i32) {
    %c0_i32 = arith.constant 0 : i32
    %c0_i32_0 = arith.constant 0 : i32
    %c0_i32_1 = arith.constant 0 : i32
    return %c0_i32, %c0_i32_0 : i32, i32
  }
  func.func @transform_3(%arg0: i32) -> (i32, i32) {
    %c0_i32 = arith.constant 0 : i32
    %c0_i32_0 = arith.constant 0 : i32
    %c0_i32_1 = arith.constant 0 : i32
    return %c0_i32, %c0_i32_0 : i32, i32
  }
}

</mosaic_0001>

<llo_original>
// kernel: tpu_custom_call.1
$region0: #{tpu_custom_call.1}
  #allocation0 [shape = 'u32[]', space=smem, size = 0x4, offset = 0x4, fixed_abs, tag = 'smem constant byte address 0x4 - core index']
  #allocation1 [shape = 'u32[144,128]{1,0:T(1,128)}', space=vmem, size = 0x12000, scoped, tag = 'internal scratch']
  #allocation2 [shape = 'f32[16,128]{1,0:T(8,128)}', space=vmem, size = 0x2000, scoped, tag = 'scratch operand']
  %s0 = inlined_call_operand.hbm [shape: f32[16,512], index: 0, kind: input, shape index: {}]
  %s1 = inlined_call_operand.hbm [shape: f32[512,128], index: 1, kind: input, shape index: {}]
  %s2 = inlined_call_operand.vmem [shape: f32[1,128], index: 2, kind: input, shape index: {}]
  %s3 = inlined_call_operand.hbm [shape: f32[16,128], index: 3, kind: output, shape index: {}]
  %s4 = sld [smem:[#allocation0]]
  $region61: #{tpu_custom_call.1} parent=0
    _
  %s6 = ssub.s32 1, %s4
  %s7 = scalar_select 0, %s6, %s4
  $region1: #{tpu_custom_call.1} parent=0
    #allocation3 [shape = 'u8[32768]{0}', space=vmem, size = 0x8000, scoped, tag = 'input window, operand 0']
    #allocation4 [shape = 's32[2]{0}', space=sflag, size = 0x8, scoped, tag = 'scoped memory for tpu_custom_call.1']
    #allocation5 [shape = 's32[2]{0}', space=sflag, size = 0x8, scoped, tag = 'scoped memory for tpu_custom_call.1']
    #allocation6 [shape = 'u8[262144]{0}', space=vmem, size = 0x40000, scoped, tag = 'input window, operand 1']
    #allocation7 [shape = 's32[2]{0}', space=sflag, size = 0x8, scoped, tag = 'scoped memory for tpu_custom_call.1']
    #allocation8 [shape = 'u8[8192]{0}', space=vmem, size = 0x2000, scoped, tag = 'output window, operand 0, single buffered']
    %8 = vsyncpa [#allocation4], 0
    %s9 = scalar_lea.sflag [#allocation4], 1
    %10 = vsyncpa %s9, 0
    %11 = vsyncpa [#allocation7], 0
    %s12 = scalar_lea.sflag [#allocation7], 1
    %13 = vsyncpa %s12, 0
    %14 = vsyncpa [#allocation5], 0
    loop: start=0, step=1, limit=4
    $region2: #{tpu_custom_call.1} parent=1 // loop_pre_header
      _
    $region3: #{tpu_custom_call.1} parent=1 // loop_header
      %s16 = sphi 0, %s20
      %p17 = scmp.ge.s32.totalorder %s16, 4
      %s26 = sphi 0, %s28
      %s29 = sphi 0, %s26
      %s30 = sphi 0, %s29
      %s46 = sphi 0, %s30
      %s52 = sphi 0, %s54
      %s55 = sphi 0, %s52
      %s56 = sphi 0, %s55
      %s72 = sphi 0, %s56
      %s76 = sphi 0, %s76
      %s78 = sphi 0, %s76
      %s79 = sphi 0, %s78
      %s93 = sphi 0, %s79
      %s97 = sphi 0, %s97
      %s99 = sphi 0, %s97
      %s100 = sphi 0, %s99
      %s114 = sphi 0, %s100
    $region4: #{tpu_custom_call.1} parent=1 // loop_header_branch
      %19 = sbr.rel (%p17) target = $region8
    $region5: #{tpu_custom_call.1} parent=1 // loop_body
      %s21 = ssub.s32 %s16, 1
      %s22 = ssub.s32 %s16, 2
      %s23 = sadd.s32 %s16, 1
      %s24 = ssub.s32 %s16, %s23
      %p25 = scmp.eq.s32.totalorder %s24, 0
      %s27 = sadd.s32 %s26, 1
      %s28 = scalar_select %p25, %s26, %s27
      %p31 = pneg %p25
      %p32 = scmp.eq.s32.totalorder %s16, 1
      %p33 = por %p31, %p32
      %p34 = scmp.ne.s32.totalorder %s26, %s29
      %p35 = scmp.eq.s32.totalorder %s16, 0
      %p36 = por %p34, %p35
      %p37 = scmp.ne.s32.totalorder %s26, %s29
      %p38 = scmp.eq.s32.totalorder %s21, 1
      %p39 = por %p37, %p38
      %p40 = scmp.ne.s32.totalorder %s29, %s30
      %p41 = scmp.eq.s32.totalorder %s21, 0
      %p42 = por %p40, %p41
      %p43 = scmp.ne.s32.totalorder %s29, %s30
      %p44 = scmp.eq.s32.totalorder %s22, 1
      %p45 = por %p43, %p44
      %p47 = scmp.ne.s32.totalorder %s30, %s46
      %p48 = scmp.eq.s32.totalorder %s22, 0
      %p49 = por %p47, %p48
      %s50 = ssub.s32 %s16, %s23
      %p51 = scmp.eq.s32.totalorder %s50, 0
      %s53 = sadd.s32 %s52, 1
      %s54 = scalar_select %p51, %s52, %s53
      %p57 = pneg %p51
      %p58 = scmp.eq.s32.totalorder %s16, 1
      %p59 = por %p57, %p58
      %p60 = scmp.ne.s32.totalorder %s52, %s55
      %p61 = scmp.eq.s32.totalorder %s16, 0
      %p62 = por %p60, %p61
      %p63 = scmp.ne.s32.totalorder %s52, %s55
      %p64 = scmp.eq.s32.totalorder %s21, 1
      %p65 = por %p63, %p64
      %p66 = scmp.ne.s32.totalorder %s55, %s56
      %p67 = scmp.eq.s32.totalorder %s21, 0
      %p68 = por %p66, %p67
      %p69 = scmp.ne.s32.totalorder %s55, %s56
      %p70 = scmp.eq.s32.totalorder %s22, 1
      %p71 = por %p69, %p70
      %p73 = scmp.ne.s32.totalorder %s56, %s72
      %p74 = scmp.eq.s32.totalorder %s22, 0
      %p75 = por %p73, %p74
      %s77 = sadd.s32 %s76, 1
      %p80 = scmp.eq.s32.totalorder %s16, 1
      %p81 = scmp.ne.s32.totalorder %s76, %s78
      %p82 = scmp.eq.s32.totalorder %s16, 0
      %p83 = por %p81, %p82
      %p84 = scmp.ne.s32.totalorder %s76, %s78
      %p85 = scmp.eq.s32.totalorder %s21, 1
      %p86 = por %p84, %p85
      %p87 = scmp.ne.s32.totalorder %s78, %s79
      %p88 = scmp.eq.s32.totalorder %s21, 0
      %p89 = por %p87, %p88
      %p90 = scmp.ne.s32.totalorder %s78, %s79
      %p91 = scmp.eq.s32.totalorder %s22, 1
      %p92 = por %p90, %p91
      %p94 = scmp.ne.s32.totalorder %s79, %s93
      %p95 = scmp.eq.s32.totalorder %s22, 0
      %p96 = por %p94, %p95
      %s98 = sadd.s32 %s97, 1
      %p101 = scmp.eq.s32.totalorder %s16, 1
      %p102 = scmp.ne.s32.totalorder %s97, %s99
      %p103 = scmp.eq.s32.totalorder %s16, 0
      %p104 = por %p102, %p103
      %p105 = scmp.ne.s32.totalorder %s97, %s99
      %p106 = scmp.eq.s32.totalorder %s21, 1
      %p107 = por %p105, %p106
      %p108 = scmp.ne.s32.totalorder %s99, %s100
      %p109 = scmp.eq.s32.totalorder %s21, 0
      %p110 = por %p108, %p109
      %p111 = scmp.ne.s32.totalorder %s99, %s100
      %p112 = scmp.eq.s32.totalorder %s22, 1
      %p113 = por %p111, %p112
      %p115 = scmp.ne.s32.totalorder %s100, %s114
      %p116 = scmp.eq.s32.totalorder %s22, 0
      %p117 = por %p115, %p116
      %p118 = scmp.le.s32.totalorder 1, %s16
      %p119 = scmp.lt.s32.totalorder %s16, 3
      %p120 = pnand %p118, %p119
      %p121 = pneg %p120
      // Predicated region
      $region9: #{tpu_custom_call.1} parent=5 // pred_check
        _
      $region10: #{tpu_custom_call.1} parent=5 // pred_check_branch
        %123 = sbr.rel (%p120) target = $region12
      $region11: #{tpu_custom_call.1} parent=5 // pred_region
        %s124 = ssub.s32 %s16, 1
        // Predicated region
        $region13: #{tpu_custom_call.1} parent=11 // pred_check
          %p125 = pneg %p89
        $region14: #{tpu_custom_call.1} parent=11 // pred_check_branch
          %127 = sbr.rel (%p125) target = $region16
        $region15: #{tpu_custom_call.1} parent=11 // pred_region
          _
        $region16: #{tpu_custom_call.1} parent=11 // pred_fallthru
          _
      $region12: #{tpu_custom_call.1} parent=5 // pred_fallthru
        _
      %p128 = scmp.lt.s32.totalorder %s16, 2
      // Predicated region
      $region17: #{tpu_custom_call.1} parent=5 // pred_check
        %p129 = pneg %p128
      $region18: #{tpu_custom_call.1} parent=5 // pred_check_branch
        %131 = sbr.rel (%p129) target = $region20
      $region19: #{tpu_custom_call.1} parent=5 // pred_region
        // Predicated region
        $region21: #{tpu_custom_call.1} parent=19 // pred_check
          %p132 = pneg %p36
        $region22: #{tpu_custom_call.1} parent=19 // pred_check_branch
          %134 = sbr.rel (%p132) target = $region24
        $region23: #{tpu_custom_call.1} parent=19 // pred_region
          %s135 = sand.u32 %s26, 1
          %s136 = scalar_lea.sflag [#allocation4], %s135
          %s137 = sand.u32 %s26, 1
          %s138 = smul.addr %s137, 32
          %s139 = scalar_lea.vmem [#allocation3], %s138
          %s140 = smul.u32 2, %s16
          %s142 = ssub.s32 512, 512
          %143 = vsyncadd %s136, %s142
          %s144 = smul.addr %s140, 128
          %s145 = scalar_lea.hbm %s0, %s144
          %s146 = sshll.u32 %s139, 4
          %s147 = int_to_ptr.vmem [resolvable:$true] %s146
          %152 = dma.hbm_to_vmem [thread:$0]  %s145, 512, %s147, %s136, 512, 256, 16
        $region24: #{tpu_custom_call.1} parent=19 // pred_fallthru
          _
        // Predicated region
        $region25: #{tpu_custom_call.1} parent=19 // pred_check
          %p153 = pneg %p62
        $region26: #{tpu_custom_call.1} parent=19 // pred_check_branch
          %155 = sbr.rel (%p153) target = $region28
        $region27: #{tpu_custom_call.1} parent=19 // pred_region
          %s156 = sand.u32 %s52, 1
          %s157 = scalar_lea.sflag [#allocation7], %s156
          %s158 = sand.u32 %s52, 1
          %s159 = smul.addr %s158, 256
          %s160 = scalar_lea.vmem [#allocation6], %s159
          %s161 = smul.u32 32, %s16
          %s163 = ssub.s32 4096, 4096
          %164 = vsyncadd %s157, %s163
          %s165 = smul.addr %s161, 128
          %s166 = scalar_lea.hbm %s1, %s165
          %s167 = sshll.u32 %s160, 4
          %s168 = int_to_ptr.vmem [resolvable:$true] %s167
          %173 = dma.hbm_to_vmem [thread:$0]  %s166, 4096, %s168, %s157, 128, 128, 8
        $region28: #{tpu_custom_call.1} parent=19 // pred_fallthru
          _
      $region20: #{tpu_custom_call.1} parent=5 // pred_fallthru
        _
      %p174 = scmp.le.s32.totalorder 1, %s16
      %p175 = scmp.lt.s32.totalorder %s16, 3
      %p176 = pnand %p174, %p175
      %p177 = pneg %p176
      // Predicated region
      $region29: #{tpu_custom_call.1} parent=5 // pred_check
        _
      $region30: #{tpu_custom_call.1} parent=5 // pred_check_branch
        %179 = sbr.rel (%p176) target = $region32
      $region31: #{tpu_custom_call.1} parent=5 // pred_region
        %s180 = ssub.s32 %s16, 1
        %s181 = sand.u32 %s29, 1
        %s182 = scalar_lea.sflag [#allocation4], %s181
        %s183 = sand.u32 %s29, 1
        %s184 = smul.addr %s183, 32
        %s185 = scalar_lea.vmem [#allocation3], %s184
        // Predicated region
        $region33: #{tpu_custom_call.1} parent=31 // pred_check
          %p186 = pneg %p42
        $region34: #{tpu_custom_call.1} parent=31 // pred_check_branch
          %188 = sbr.rel (%p186) target = $region36
        $region35: #{tpu_custom_call.1} parent=31 // pred_region
          %189 = dma.done %s182, 512
        $region36: #{tpu_custom_call.1} parent=31 // pred_fallthru
          _
        %s190 = sand.u32 %s55, 1
        %s191 = scalar_lea.sflag [#allocation7], %s190
        %s192 = sand.u32 %s55, 1
        %s193 = smul.addr %s192, 256
        %s194 = scalar_lea.vmem [#allocation6], %s193
        // Predicated region
        $region37: #{tpu_custom_call.1} parent=31 // pred_check
          %p195 = pneg %p68
        $region38: #{tpu_custom_call.1} parent=31 // pred_check_branch
          %197 = sbr.rel (%p195) target = $region40
        $region39: #{tpu_custom_call.1} parent=31 // pred_region
          %198 = dma.done %s191, 4096
        $region40: #{tpu_custom_call.1} parent=31 // pred_fallthru
          _
        %s199 = sand.u32 %s29, 1
        %s200 = scalar_lea.sflag [#allocation4], %s199
        %s201 = sand.u32 %s29, 1
        %s202 = smul.addr %s201, 32
        %s203 = scalar_lea.vmem [#allocation3], %s202
        %p204 = pneg %p42
        %p205 = pneg %p39
        %s206 = sand.u32 %s55, 1
        %s207 = scalar_lea.sflag [#allocation7], %s206
        %s208 = sand.u32 %s55, 1
        %s209 = smul.addr %s208, 256
        %s210 = scalar_lea.vmem [#allocation6], %s209
        %p211 = pneg %p68
        %p212 = pneg %p65
        %p213 = pneg %p89
        %p214 = pneg %p86
        %p215 = pneg %p110
        %p216 = pneg %p107
        %s217 = smul.u32 2, %s21
        %s218 = smul.u32 32, %s21
        %p219 = scmp.eq.s32.totalorder %s21, 0
        // Predicated region
        $region41: #{tpu_custom_call.1} parent=31 // pred_check
          %p220 = pneg %p219
        $region42: #{tpu_custom_call.1} parent=31 // pred_check_branch
          %222 = sbr.rel (%p220) target = $region44
        $region43: #{tpu_custom_call.1} parent=31 // pred_region
          %223 = vst [vmem:[#allocation2] sm:$0xff] 0.0
          %224 = vst [vmem:[#allocation2 + $0x8] sm:$0xff] 0.0
        $region44: #{tpu_custom_call.1} parent=31 // pred_fallthru
          _
        %v225 = vld [vmem:[#allocation2] sm:$0xff]
        %v226 = vld [vmem:[#allocation2 + $0x8] sm:$0xff]
        %v227 = vld [vmem:[%s185] sm:$0xff]
        %v228 = vld [vmem:[%s185 + $0x8] sm:$0xff]
        %v229 = vld [vmem:[%s185 + $0x10] sm:$0xff]
        %v230 = vld [vmem:[%s185 + $0x18] sm:$0xff]
        %v231 = vld [vmem:[%s194] sm:$0xff]
        %v232 = vld [vmem:[%s194 + $0x8] sm:$0xff]
        %v233 = vld [vmem:[%s194 + $0x10] sm:$0xff]
        %v234 = vld [vmem:[%s194 + $0x18] sm:$0xff]
        %v235 = vld [vmem:[%s194 + $0x20] sm:$0xff]
        %v236 = vld [vmem:[%s194 + $0x28] sm:$0xff]
        %v237 = vld [vmem:[%s194 + $0x30] sm:$0xff]
        %v238 = vld [vmem:[%s194 + $0x38] sm:$0xff]
        %v239 = vld [vmem:[%s194 + $0x40] sm:$0xff]
        %v240 = vld [vmem:[%s194 + $0x48] sm:$0xff]
        %v241 = vld [vmem:[%s194 + $0x50] sm:$0xff]
        %v242 = vld [vmem:[%s194 + $0x58] sm:$0xff]
        %v243 = vld [vmem:[%s194 + $0x60] sm:$0xff]
        %v244 = vld [vmem:[%s194 + $0x68] sm:$0xff]
        %v245 = vld [vmem:[%s194 + $0x70] sm:$0xff]
        %v246 = vld [vmem:[%s194 + $0x78] sm:$0xff]
        %v247 = vld [vmem:[%s194 + $0x80] sm:$0xff]
        %v248 = vld [vmem:[%s194 + $0x88] sm:$0xff]
        %v249 = vld [vmem:[%s194 + $0x90] sm:$0xff]
        %v250 = vld [vmem:[%s194 + $0x98] sm:$0xff]
        %v251 = vld [vmem:[%s194 + $0xa0] sm:$0xff]
        %v252 = vld [vmem:[%s194 + $0xa8] sm:$0xff]
        %v253 = vld [vmem:[%s194 + $0xb0] sm:$0xff]
        %v254 = vld [vmem:[%s194 + $0xb8] sm:$0xff]
        %v255 = vld [vmem:[%s194 + $0xc0] sm:$0xff]
        %v256 = vld [vmem:[%s194 + $0xc8] sm:$0xff]
        %v257 = vld [vmem:[%s194 + $0xd0] sm:$0xff]
        %v258 = vld [vmem:[%s194 + $0xd8] sm:$0xff]
        %v259 = vld [vmem:[%s194 + $0xe0] sm:$0xff]
        %v260 = vld [vmem:[%s194 + $0xe8] sm:$0xff]
        %v261 = vld [vmem:[%s194 + $0xf0] sm:$0xff]
        %v262 = vld [vmem:[%s194 + $0xf8] sm:$0xff]
        %263 = vmatprep.subr.mxu0 0.0
        %264 = vmatpush1.msra.mxu0 %v231
        %265 = vmatprep.subr.mxu0 0.0
        %266 = vmatpush1.msra.mxu0 %v232
        %267 = vmatprep.subr.mxu0 0.0
        %268 = vmatpush1.msra.mxu0 %v233
        %269 = vmatprep.subr.mxu0 0.0
        %270 = vmatpush1.msra.mxu0 %v234
        %271 = vmatprep.subr.mxu0 0.0
        %272 = vmatpush1.msra.mxu0 %v235
        %273 = vmatprep.subr.mxu0 0.0
        %274 = vmatpush1.msra.mxu0 %v236
        %275 = vmatprep.subr.mxu0 0.0
        %276 = vmatpush1.msra.mxu0 %v237
        %277 = vmatprep.subr.mxu0 0.0
        %278 = vmatpush1.msra.mxu0 %v238
        %279 = vmatprep.subr.mxu0 0.0
        %280 = vmatpush1.msra.mxu0 %v239
        %281 = vmatprep.subr.mxu0 0.0
        %282 = vmatpush1.msra.mxu0 %v240
        %283 = vmatprep.subr.mxu0 0.0
        %284 = vmatpush1.msra.mxu0 %v241
        %285 = vmatprep.subr.mxu0 0.0
        %286 = vmatpush1.msra.mxu0 %v242
        %287 = vmatprep.subr.mxu0 0.0
        %288 = vmatpush1.msra.mxu0 %v243
        %289 = vmatprep.subr.mxu0 0.0
        %290 = vmatpush1.msra.mxu0 %v244
        %291 = vmatprep.subr.mxu0 0.0
        %292 = vmatpush1.msra.mxu0 %v245
        %293 = vmatprep.subr.mxu0 0.0
        %294 = vmatpush1.msra.mxu0 %v246
        %295 = vmatprep.subr.mxu0 0.0
        %296 = vmatpush1.msra.mxu0 %v247
        %297 = vmatprep.subr.mxu0 0.0
        %298 = vmatpush1.msra.mxu0 %v248
        %299 = vmatprep.subr.mxu0 0.0
        %300 = vmatpush1.msra.mxu0 %v249
        %301 = vmatprep.subr.mxu0 0.0
        %302 = vmatpush1.msra.mxu0 %v250
        %303 = vmatprep.subr.mxu0 0.0
        %304 = vmatpush1.msra.mxu0 %v251
        %305 = vmatprep.subr.mxu0 0.0
        %306 = vmatpush1.msra.mxu0 %v252
        %307 = vmatprep.subr.mxu0 0.0
        %308 = vmatpush1.msra.mxu0 %v253
        %309 = vmatprep.subr.mxu0 0.0
        %310 = vmatpush1.msra.mxu0 %v254
        %311 = vmatprep.subr.mxu0 0.0
        %312 = vmatpush1.msra.mxu0 %v255
        %313 = vmatprep.subr.mxu0 0.0
        %314 = vmatpush1.msra.mxu0 %v256
        %315 = vmatprep.subr.mxu0 0.0
        %316 = vmatpush1.msra.mxu0 %v257
        %317 = vmatprep.subr.mxu0 0.0
        %318 = vmatpush1.msra.mxu0 %v258
        %319 = vmatprep.subr.mxu0 0.0
        %320 = vmatpush1.msra.mxu0 %v259
        %321 = vmatprep.subr.mxu0 0.0
        %322 = vmatpush1.msra.mxu0 %v260
        %323 = vmatprep.subr.mxu0 0.0
        %324 = vmatpush1.msra.mxu0 %v261
        %325 = vmatprep.subr.mxu0 0.0
        %326 = vmatpush1.msra.mxu0 %v262
        %327 = vmatprep.mubr.f32.mxu0 %v228
        %328 = vmatmul.mubr.f32.gmra.mrb[0].mxu0 %v227
        %v329 = vpop.f32.mrb[0].mxu0
        %v330 = vadd.f32 0.0, %v329
        %v331 = vpop.f32.mrb[0].mxu0
        %332 = vmatprep.mubr.f32.mxu0 %v230
        %333 = vmatmul.mubr.f32.gmra.mrb[0].mxu0 %v229
        %v334 = vpop.f32.mrb[0].mxu0
        %v335 = vadd.f32 0.0, %v334
        %v336 = vpop.f32.mrb[0].mxu0
        %337 = vdwg.mxu0
        %v338 = vadd.f32 %v225, %v330
        %v339 = vadd.f32 %v226, %v335
        %340 = vst [vmem:[#allocation2] sm:$0xff] %v338
        %341 = vst [vmem:[#allocation2 + $0x8] sm:$0xff] %v339
        %p342 = scmp.eq.s32.totalorder %s21, 1
        // Predicated region
        $region45: #{tpu_custom_call.1} parent=31 // pred_check
          %p343 = pneg %p342
        $region46: #{tpu_custom_call.1} parent=31 // pred_check_branch
          %345 = sbr.rel (%p343) target = $region48
        $region47: #{tpu_custom_call.1} parent=31 // pred_region
          %v346 = vld [vmem:[#allocation2] sm:$0xff]
          %v347 = vld [vmem:[#allocation2 + $0x8] sm:$0xff]
          %v348 = vld [vmem:[%s2] sm:$0x1]
          %v350 = vlaneseq
          %v351 = vshrl.u32 %v350, 7
          %v352 = vsub.s32 0, %v351
          %v353 = vrot.slane %v348, %v352
          %v355 = vadd.f32 %v346, %v353
          %v356 = vadd.f32 %v347, %v353
          %357 = vst [vmem:[#allocation8] sm:$0xff] %v355
          %358 = vst [vmem:[#allocation8 + $0x8] sm:$0xff] %v356
        $region48: #{tpu_custom_call.1} parent=31 // pred_fallthru
          _
        // Predicated region
        $region49: #{tpu_custom_call.1} parent=31 // pred_check
          %p359 = pneg %p107
        $region50: #{tpu_custom_call.1} parent=31 // pred_check_branch
          %361 = sbr.rel (%p359) target = $region52
        $region51: #{tpu_custom_call.1} parent=31 // pred_region
          %s363 = ssub.s32 256, 256
          %364 = vsyncadd [#allocation5], %s363
          %s365 = sshll.u32 [#allocation8], 4
          %s366 = int_to_ptr.vmem [resolvable:$true] %s365
          %371 = dma.vmem_to_hbm [thread:$0]  %s366, 256, %s3, [#allocation5], 128, 128, 8
        $region52: #{tpu_custom_call.1} parent=31 // pred_fallthru
          _
        // Predicated region
        $region53: #{tpu_custom_call.1} parent=31 // pred_check
          %p372 = pneg %p107
        $region54: #{tpu_custom_call.1} parent=31 // pred_check_branch
          %374 = sbr.rel (%p372) target = $region56
        $region55: #{tpu_custom_call.1} parent=31 // pred_region
          %375 = dma.done [#allocation5], 256
        $region56: #{tpu_custom_call.1} parent=31 // pred_fallthru
          _
      $region32: #{tpu_custom_call.1} parent=5 // pred_fallthru
        _
      %p376 = scmp.le.s32.totalorder 2, %s16
      // Predicated region
      $region57: #{tpu_custom_call.1} parent=5 // pred_check
        %p377 = pneg %p376
      $region58: #{tpu_custom_call.1} parent=5 // pred_check_branch
        %379 = sbr.rel (%p377) target = $region60
      $region59: #{tpu_custom_call.1} parent=5 // pred_region
        %s380 = ssub.s32 %s16, 2
      $region60: #{tpu_custom_call.1} parent=5 // pred_fallthru
        _
    $region6: #{tpu_custom_call.1} parent=1 // loop_footer
      %s20 = sadd.s32 1, %s16
    $region7: #{tpu_custom_call.1} parent=1 // loop_footer_branch
      %15 = sbr.rel target = $region3
    $region8: #{tpu_custom_call.1} parent=1 // loop_exit
      _
    %381 = vsyncpa [#allocation4], 1
    %s382 = scalar_lea.sflag [#allocation4], 1
    %383 = vsyncpa %s382, 1
    %384 = vsyncpa [#allocation7], 1
    %s385 = scalar_lea.sflag [#allocation7], 1
    %386 = vsyncpa %s385, 1
    %387 = vsyncpa [#allocation5], 1
    %s388 = scalar_lea.sflag [#allocation5], 1
    %389 = vsyncpa %s388, 1

</llo_original>
